<compile_context>
chip_gen: v7x
topology: tpu7x:2x2x1
jax: 0.10.0
libtpu: 0.0.40
codegen_flags: <defaults>
</compile_context>

<pallas_src>
import math
from functools import partial

import jax
import jax.numpy as jnp
import numpy as np
from jax.experimental import pallas as pl
from jax.experimental.pallas import tpu as pltpu


def _round_up(x, m):
    return ((x + m - 1) // m) * m


def _erf(x):
    # Abramowitz–Stegun 7.1.26 rational approximation (max abs err ~1.5e-7 ≈ f32 ulp).
    # Mosaic has no erf primitive; only exp/abs/where/mul are used, which lower cleanly.
    a1, a2, a3, a4, a5 = 0.254829592, -0.284496736, 1.421413741, -1.453152027, 1.061405429
    p = 0.3275911
    sgn = jnp.where(x >= 0.0, 1.0, -1.0)
    ax = jnp.abs(x)
    d = 1.0 + p * ax
    # EUP approx reciprocal + one Newton step: divide stays off the VALU slot while
    # keeping ~f32 accuracy (needed for the exact-GELU / f32 path only).
    t = pl.reciprocal(d, approx=True)
    t = t * (2.0 - d * t)
    poly = ((((a5 * t + a4) * t + a3) * t + a2) * t + a1) * t
    return sgn * (1.0 - poly * jnp.exp(-ax * ax))


def _gelu_erf(x):
    # PyTorch nn.GELU() default = exact (erf-based) GELU.  f32 path.
    return 0.5 * x * (1.0 + _erf(x * (1.0 / math.sqrt(2.0))))


def _gelu_tanh(x):
    # tanh-form GELU (~7 VALU ops + one EUP tanh).  Used on the bf16 fast path where
    # packed-bf16 VPU throughput matters and the approximation error (<~1e-3) is far
    # below bf16 rounding noise.
    c0 = 0.7978845608028654  # sqrt(2/pi)
    c1 = 0.044715
    x3 = x * x * x
    return 0.5 * x * (1.0 + jnp.tanh(c0 * (x + c1 * x3)))


def alignment_kernel(x_ref, w1_ref, b1_ref, w2_ref, b2_ref, g_ref, beta_ref, o_ref,
                     *, p_real, exact_gelu):
    # Hoist the small (1, P) rows to f32 once per grid step (JAX does not CSE broadcasts).
    b1 = b1_ref[...].astype(jnp.float32)
    b2 = b2_ref[...].astype(jnp.float32)
    g = g_ref[...].astype(jnp.float32)
    beta = beta_ref[...].astype(jnp.float32)

    # linear_layer1: inputs stay in their native dtype (bf16 fast path on the MXU);
    # accumulation is f32 via preferred_element_type.
    h = jnp.dot(x_ref[...], w1_ref[...], preferred_element_type=jnp.float32) + b1

    if exact_gelu:
        # f32 path: exact erf GELU (matches torch nn.GELU() numerics).
        h = _gelu_erf(h).astype(w2_ref.dtype)
    else:
        # bf16 fast path: cheap tanh GELU evaluated in the narrow dtype -> halves the
        # VALU-slot pressure that bounds this kernel on v6e/v7x.
        h = _gelu_tanh(h.astype(w2_ref.dtype))

    # linear_layer2 (+ dropout, identity at inference).
    y = jnp.dot(h, w2_ref[...], preferred_element_type=jnp.float32) + b2

    # LayerNorm over the (real) projection dim; eps matches torch default 1e-5.
    # Fused single-pass statistics: var = E[y^2] - E[y]^2 over the real lanes.
    p_pad = y.shape[-1]
    inv_p = 1.0 / float(p_real)
    if p_real != p_pad:
        # Lane dim was padded to a multiple of 128: mask padded lanes out of the stats.
        # (Padded lanes of y are exactly zero by construction of the padded operands.)
        lane = jax.lax.broadcasted_iota(jnp.int32, (1, p_pad), 1)
        ym = jnp.where(lane < p_real, y, 0.0)
    else:
        ym = y
    mean = jnp.sum(ym, axis=-1, keepdims=True) * inv_p
    meansq = jnp.sum(ym * ym, axis=-1, keepdims=True) * inv_p
    var = jnp.maximum(meansq - mean * mean, 0.0)
    y_norm = (y - mean) * jax.lax.rsqrt(var + 1e-5)
    o_ref[...] = (y_norm * g + beta).astype(o_ref.dtype)


def audio_encoder_forward(last_hidden_state, w1, b1, w2, b2, gamma, beta,
                          *, tm=None, exact_gelu=None, lane_multiple=128):
    """Applies the fused AlignmentLayer to the (B, T, H) hidden states via Pallas."""
    B, T, H = last_hidden_state.shape
    P = w1.shape[1]
    M = B * T
    in_dtype = last_hidden_state.dtype
    in_bytes = np.dtype(in_dtype).itemsize
    w_dtype_bytes = np.dtype(w1.dtype).itemsize

    if exact_gelu is None:
        # Exact erf GELU for the f32 (torch-matching) path; cheap tanh GELU otherwise.
        exact_gelu = (np.dtype(in_dtype) == np.dtype(np.float32))

    # Lane-dense layout: pad hidden / projection dims to multiples of 128.
    H_pad = _round_up(H, lane_multiple)
    P_pad = _round_up(P, lane_multiple)

    # Row-tile granularity must respect sublane packing of the input dtype
    # (8 rows for 4-byte, 16 for bf16, 32 for 1-byte).
    sublane = max(8, 32 // in_bytes)
    m_ceil = _round_up(M, sublane)

    # Physical VMEM (generation-aware) minus headroom for compiler scratch/semaphores.
    try:
        phys_vmem = int(pltpu.get_tpu_info().vmem_capacity_bytes)
    except Exception:
        phys_vmem = 64 * 1024 * 1024
    vmem_cap = max(24 * 1024 * 1024, phys_vmem - 16 * 1024 * 1024)

    w_bytes = (H_pad * P_pad + P_pad * P_pad + 4 * P_pad) * w_dtype_bytes

    def _vmem_est(rows):
        # Double-buffered x / out tiles, weights (conservatively counted double even
        # though we request single-buffering), and f32 intermediates (h, y).
        return (2 * rows * H_pad * in_bytes
                + 2 * rows * P_pad * in_bytes
                + 2 * w_bytes
                + 2 * rows * P_pad * 4)

    if tm is None:
        # Largest row tile whose working set fits in ~half the (headroomed) VMEM:
        # lands around 2048 on v5e/v6e (128 MiB) and 1024 on v7x (64 MiB) for real
        # wav2vec2 sizes, while amortizing the ~0.35 us/step pipeline overhead.
        tm = sublane
        budget = 0.5 * vmem_cap
        for cand in (2048, 1024, 512, 256, 128, 64, 32, 16, 8):
            if cand % sublane == 0 and _vmem_est(cand) <= budget:
                tm = cand
                break
    tm_eff = max(sublane, min(_round_up(tm, sublane), m_ceil))

    # Lane-pad only (no wrapper-side row padding; Pallas masks the ragged last row tile).
    x2 = last_hidden_state.reshape(M, H)
    if H_pad != H:
        x2 = jnp.pad(x2, ((0, 0), (0, H_pad - H)))
    w1p = jnp.pad(w1, ((0, H_pad - H), (0, P_pad - P))) if (H_pad, P_pad) != (H, P) else w1
    w2p = jnp.pad(w2, ((0, P_pad - P), (0, P_pad - P))) if P_pad != P else w2

    def _pad_row(v):
        return jnp.pad(v, ((0, 0), (0, P_pad - P))) if P_pad != P else v

    b1p, b2p, gp, betap = (_pad_row(v) for v in (b1, b2, gamma, beta))

    grid = (pl.cdiv(M, tm_eff),)

    cost = pl.CostEstimate(
        flops=2 * M * (H_pad * P_pad + P_pad * P_pad),
        transcendentals=M * P_pad + M,                      # exp/tanh in GELU + rsqrt
        bytes_accessed=M * H_pad * in_bytes + M * P_pad * in_bytes + w_bytes,
    )

    vmem_limit = int(min(vmem_cap, max(32 * 1024 * 1024, int(1.5 * _vmem_est(tm_eff)))))

    def _run(single_buffer_consts):
        const_kw = {}
        if single_buffer_consts and hasattr(pl, "Buffered"):
            # Weights / bias / gamma / beta have a constant block index: single-buffer
            # them so they are fetched once and only occupy one VMEM copy.
            const_kw = {"pipeline_mode": pl.Buffered(1)}
        in_specs = [
            pl.BlockSpec((tm_eff, H_pad), lambda i: (i, 0)),             # x rows
            pl.BlockSpec((H_pad, P_pad), lambda i: (0, 0), **const_kw),  # W1 (resident)
            pl.BlockSpec((1, P_pad), lambda i: (0, 0), **const_kw),      # b1
            pl.BlockSpec((P_pad, P_pad), lambda i: (0, 0), **const_kw),  # W2 (resident)
            pl.BlockSpec((1, P_pad), lambda i: (0, 0), **const_kw),      # b2
            pl.BlockSpec((1, P_pad), lambda i: (0, 0), **const_kw),      # LayerNorm gamma
            pl.BlockSpec((1, P_pad), lambda i: (0, 0), **const_kw),      # LayerNorm beta
        ]
        return pl.pallas_call(
            partial(alignment_kernel, p_real=P, exact_gelu=exact_gelu),
            out_shape=jax.ShapeDtypeStruct((M, P_pad), in_dtype),
            grid_spec=pltpu.PrefetchScalarGridSpec(
                num_scalar_prefetch=0,
                grid=grid,
                in_specs=in_specs,
                out_specs=pl.BlockSpec((tm_eff, P_pad), lambda i: (i, 0)),
            ),
            compiler_params=pltpu.CompilerParams(
                dimension_semantics=("parallel",),           # megacore-shardable row axis
                vmem_limit_bytes=vmem_limit,
            ),
            cost_estimate=cost,
        )(x2, w1p, b1p, w2p, b2p, gp, betap)

    try:
        out = _run(True)
    except Exception:
        # Fallback for toolchains without BlockSpec pipeline_mode support.
        out = _run(False)

    if P_pad != P:
        out = out[:, :P]
    return out.reshape(B, T, P)


def _reference(x, w1, b1, w2, b2, gamma, beta):
    # Plain-JAX reference: exact (erf) GELU, eval-mode dropout, torch-default LayerNorm.
    h = x @ w1 + b1
    h = jax.nn.gelu(h, approximate=False)
    y = h @ w2 + b2
    mean = jnp.mean(y, axis=-1, keepdims=True)
    var = jnp.mean((y - mean) ** 2, axis=-1, keepdims=True)
    return (y - mean) / jnp.sqrt(var + 1e-5) * gamma + beta


if __name__ == "__main__":
    key = jax.random.PRNGKey(0)
    B, T = 2, 8            # batch, encoder frames
    H = 32                 # wav2vec2 hidden_size (small synthetic stand-in)
    P = 32                 # CFG.projection_dim (small synthetic stand-in)

    ks = jax.random.split(key, 5)

    # Synthetic `last_hidden_state` of the (untranslated) pretrained Wav2Vec2 encoder.
    last_hidden_state = jax.random.normal(ks[0], (B, T, H), dtype=jnp.float32)

    # AlignmentLayer parameters (torch Linear-style init; weights stored (in, out)).
    k1 = 1.0 / math.sqrt(H)
    w1 = jax.random.uniform(ks[1], (H, P), jnp.float32, -k1, k1)
    b1 = jax.random.uniform(ks[2], (1, P), jnp.float32, -k1, k1)
    k2 = 1.0 / math.sqrt(P)
    w2 = jax.random.uniform(ks[3], (P, P), jnp.float32, -k2, k2)
    b2 = jax.random.uniform(ks[4], (1, P), jnp.float32, -k2, k2)
    gamma = jnp.ones((1, P), jnp.float32)   # LayerNorm weight
    beta = jnp.zeros((1, P), jnp.float32)   # LayerNorm bias

    # --- f32 path (exact erf GELU, matches the torch module numerics) ---
    out = audio_encoder_forward(last_hidden_state, w1, b1, w2, b2, gamma, beta)
    out = jax.block_until_ready(out)
    ref = _reference(last_hidden_state.reshape(B * T, H), w1, b1, w2, b2,
                     gamma, beta).reshape(B, T, P)
    np.testing.assert_allclose(np.asarray(out), np.asarray(ref), atol=1e-4, rtol=1e-4)

    # --- bf16 fast path (bf16 MXU inputs, bf16 tanh-GELU, f32 LayerNorm stats) ---
    xb = last_hidden_state.astype(jnp.bfloat16)
    w1b, b1b = w1.astype(jnp.bfloat16), b1.astype(jnp.bfloat16)
    w2b, b2b = w2.astype(jnp.bfloat16), b2.astype(jnp.bfloat16)
    gb, betab = gamma.astype(jnp.bfloat16), beta.astype(jnp.bfloat16)
    out_bf16 = audio_encoder_forward(xb, w1b, b1b, w2b, b2b, gb, betab)
    out_bf16 = jax.block_until_ready(out_bf16)
    ref_bf16 = _reference(
        xb.astype(jnp.float32).reshape(B * T, H),
        w1b.astype(jnp.float32), b1b.astype(jnp.float32),
        w2b.astype(jnp.float32), b2b.astype(jnp.float32),
        gb.astype(jnp.float32), betab.astype(jnp.float32)).reshape(B, T, P)
    np.testing.assert_allclose(np.asarray(out_bf16, dtype=np.float32),
                               np.asarray(ref_bf16), atol=5e-2, rtol=5e-2)

    print("KERNEL_OK")
</pallas_src>

<mosaic_0001>
module attributes {stable_mosaic.version = 11 : i64} {
  func.func @alignment_kernel(%arg0: i32, %arg1: memref<16x128xf32, #tpu.memory_space<vmem>>, %arg2: memref<128x128xf32, #tpu.memory_space<vmem>>, %arg3: memref<1x128xf32, #tpu.memory_space<vmem>>, %arg4: memref<128x128xf32, #tpu.memory_space<vmem>>, %arg5: memref<1x128xf32, #tpu.memory_space<vmem>>, %arg6: memref<1x128xf32, #tpu.memory_space<vmem>>, %arg7: memref<1x128xf32, #tpu.memory_space<vmem>>, %arg8: memref<16x128xf32, #tpu.memory_space<vmem>>) attributes {dimension_semantics = [#tpu.dimension_semantics<parallel>], iteration_bounds = array<i64: 1>, scalar_prefetch = 0 : i64, scratch_operands = 0 : i64, tpu.core_type = #tpu.core_type<tc>, window_params = [{transform_indices = @transform_0, window_bounds = array<i64: 16, 128>}, {pipeline_mode = #tpu.pipeline_mode<synchronous>, transform_indices = @transform_1, window_bounds = array<i64: 128, 128>}, {pipeline_mode = #tpu.pipeline_mode<synchronous>, transform_indices = @transform_2, window_bounds = array<i64: 1, 128>}, {pipeline_mode = #tpu.pipeline_mode<synchronous>, transform_indices = @transform_3, window_bounds = array<i64: 128, 128>}, {pipeline_mode = #tpu.pipeline_mode<synchronous>, transform_indices = @transform_4, window_bounds = array<i64: 1, 128>}, {pipeline_mode = #tpu.pipeline_mode<synchronous>, transform_indices = @transform_5, window_bounds = array<i64: 1, 128>}, {pipeline_mode = #tpu.pipeline_mode<synchronous>, transform_indices = @transform_6, window_bounds = array<i64: 1, 128>}, {transform_indices = @transform_7, window_bounds = array<i64: 16, 128>}]} {
    %c0 = arith.constant 0 : index
    %c0_0 = arith.constant 0 : index
    %0 = vector.load %arg3[%c0, %c0_0] : memref<1x128xf32, #tpu.memory_space<vmem>>, vector<1x128xf32>
    %c0_1 = arith.constant 0 : index
    %c0_2 = arith.constant 0 : index
    %1 = vector.load %arg5[%c0_1, %c0_2] : memref<1x128xf32, #tpu.memory_space<vmem>>, vector<1x128xf32>
    %c0_3 = arith.constant 0 : index
    %c0_4 = arith.constant 0 : index
    %2 = vector.load %arg6[%c0_3, %c0_4] : memref<1x128xf32, #tpu.memory_space<vmem>>, vector<1x128xf32>
    %c0_5 = arith.constant 0 : index
    %c0_6 = arith.constant 0 : index
    %3 = vector.load %arg7[%c0_5, %c0_6] : memref<1x128xf32, #tpu.memory_space<vmem>>, vector<1x128xf32>
    %c0_7 = arith.constant 0 : index
    %c0_8 = arith.constant 0 : index
    %4 = vector.load %arg1[%c0_7, %c0_8] : memref<16x128xf32, #tpu.memory_space<vmem>>, vector<16x128xf32>
    %c0_9 = arith.constant 0 : index
    %c0_10 = arith.constant 0 : index
    %5 = vector.load %arg2[%c0_9, %c0_10] : memref<128x128xf32, #tpu.memory_space<vmem>>, vector<128x128xf32>
    %cst = arith.constant dense<0.000000e+00> : vector<16x128xf32>
    %6 = tpu.matmul %4, %5, %cst {dimension_numbers = #tpu.dot_dimension_numbers<[1], [0], [0], [1], [0, 0, 1, 1], [], []>} : vector<16x128xf32>, vector<128x128xf32>, vector<16x128xf32> -> vector<16x128xf32>
    %7 = vector.broadcast %0 : vector<1x128xf32> to vector<16x128xf32>
    %8 = arith.addf %6, %7 : vector<16x128xf32>
    %cst_11 = arith.constant 5.000000e-01 : f32
    %9 = vector.broadcast %cst_11 : f32 to vector<16x128xf32>
    %10 = arith.mulf %9, %8 : vector<16x128xf32>
    %cst_12 = arith.constant 0.707106769 : f32
    %11 = vector.broadcast %cst_12 : f32 to vector<16x128xf32>
    %12 = arith.mulf %8, %11 : vector<16x128xf32>
    %cst_13 = arith.constant 0.000000e+00 : f32
    %13 = vector.broadcast %cst_13 : f32 to vector<16x128xf32>
    %14 = arith.cmpf oge, %12, %13 : vector<16x128xf32>
    %cst_14 = arith.constant 1.000000e+00 : f32
    %cst_15 = arith.constant -1.000000e+00 : f32
    %15 = vector.broadcast %cst_14 : f32 to vector<16x128xf32>
    %16 = vector.broadcast %cst_15 : f32 to vector<16x128xf32>
    %17 = arith.select %14, %15, %16 : vector<16x128xi1>, vector<16x128xf32>
    %18 = math.absf %12 : vector<16x128xf32>
    %cst_16 = arith.constant 0.327591091 : f32
    %19 = vector.broadcast %cst_16 : f32 to vector<16x128xf32>
    %20 = arith.mulf %19, %18 : vector<16x128xf32>
    %cst_17 = arith.constant 1.000000e+00 : f32
    %21 = vector.broadcast %cst_17 : f32 to vector<16x128xf32>
    %22 = arith.addf %21, %20 : vector<16x128xf32>
    %23 = tpu.reciprocal %22 {approx = true} : vector<16x128xf32> -> vector<16x128xf32>
    %24 = arith.mulf %22, %23 : vector<16x128xf32>
    %cst_18 = arith.constant 2.000000e+00 : f32
    %25 = vector.broadcast %cst_18 : f32 to vector<16x128xf32>
    %26 = arith.subf %25, %24 : vector<16x128xf32>
    %27 = arith.mulf %23, %26 : vector<16x128xf32>
    %cst_19 = arith.constant 1.06140542 : f32
    %28 = vector.broadcast %cst_19 : f32 to vector<16x128xf32>
    %29 = arith.mulf %28, %27 : vector<16x128xf32>
    %cst_20 = arith.constant -1.45315206 : f32
    %30 = vector.broadcast %cst_20 : f32 to vector<16x128xf32>
    %31 = arith.addf %29, %30 : vector<16x128xf32>
    %32 = arith.mulf %31, %27 : vector<16x128xf32>
    %cst_21 = arith.constant 1.42141378 : f32
    %33 = vector.broadcast %cst_21 : f32 to vector<16x128xf32>
    %34 = arith.addf %32, %33 : vector<16x128xf32>
    %35 = arith.mulf %34, %27 : vector<16x128xf32>
    %cst_22 = arith.constant -0.284496725 : f32
    %36 = vector.broadcast %cst_22 : f32 to vector<16x128xf32>
    %37 = arith.addf %35, %36 : vector<16x128xf32>
    %38 = arith.mulf %37, %27 : vector<16x128xf32>
    %cst_23 = arith.constant 0.254829586 : f32
    %39 = vector.broadcast %cst_23 : f32 to vector<16x128xf32>
    %40 = arith.addf %38, %39 : vector<16x128xf32>
    %41 = arith.mulf %40, %27 : vector<16x128xf32>
    %cst_24 = arith.constant 0.000000e+00 : f32
    %42 = vector.broadcast %cst_24 : f32 to vector<16x128xf32>
    %43 = arith.subf %42, %18 : vector<16x128xf32>
    %44 = arith.mulf %43, %18 : vector<16x128xf32>
    %45 = math.exp %44 : vector<16x128xf32>
    %46 = arith.mulf %41, %45 : vector<16x128xf32>
    %cst_25 = arith.constant 1.000000e+00 : f32
    %47 = vector.broadcast %cst_25 : f32 to vector<16x128xf32>
    %48 = arith.subf %47, %46 : vector<16x128xf32>
    %49 = arith.mulf %17, %48 : vector<16x128xf32>
    %cst_26 = arith.constant 1.000000e+00 : f32
    %50 = vector.broadcast %cst_26 : f32 to vector<16x128xf32>
    %51 = arith.addf %50, %49 : vector<16x128xf32>
    %52 = arith.mulf %10, %51 : vector<16x128xf32>
    %c0_27 = arith.constant 0 : index
    %c0_28 = arith.constant 0 : index
    %53 = vector.load %arg4[%c0_27, %c0_28] : memref<128x128xf32, #tpu.memory_space<vmem>>, vector<128x128xf32>
    %cst_29 = arith.constant dense<0.000000e+00> : vector<16x128xf32>
    %54 = tpu.matmul %52, %53, %cst_29 {dimension_numbers = #tpu.dot_dimension_numbers<[1], [0], [0], [1], [0, 0, 1, 1], [], []>} : vector<16x128xf32>, vector<128x128xf32>, vector<16x128xf32> -> vector<16x128xf32>
    %55 = vector.broadcast %1 : vector<1x128xf32> to vector<16x128xf32>
    %56 = arith.addf %54, %55 : vector<16x128xf32>
    %57 = tpu.iota {dimensions = array<i32: 1>} : vector<1x128xi32>
    %c32_i32 = arith.constant 32 : i32
    %58 = vector.broadcast %c32_i32 : i32 to vector<1x128xi32>
    %59 = arith.cmpi slt, %57, %58 : vector<1x128xi32>
    %cst_30 = arith.constant 0.000000e+00 : f32
    %60 = vector.shape_cast %59 : vector<1x128xi1> to vector<1x128xi1>
    %61 = vector.broadcast %60 : vector<1x128xi1> to vector<16x128xi1>
    %62 = vector.broadcast %cst_30 : f32 to vector<16x128xf32>
    %63 = arith.select %61, %56, %62 : vector<16x128xi1>, vector<16x128xf32>
    %cst_31 = arith.constant dense<0.000000e+00> : vector<16xf32>
    %64 = vector.multi_reduction <add>, %63, %cst_31 [1] : vector<16x128xf32> to vector<16xf32>
    %65 = vector.shape_cast %64 : vector<16xf32> to vector<16x1xf32>
    %cst_32 = arith.constant 3.125000e-02 : f32
    %66 = vector.broadcast %cst_32 : f32 to vector<16x1xf32>
    %67 = arith.mulf %65, %66 : vector<16x1xf32>
    %68 = arith.mulf %63, %63 : vector<16x128xf32>
    %cst_33 = arith.constant dense<0.000000e+00> : vector<16xf32>
    %69 = vector.multi_reduction <add>, %68, %cst_33 [1] : vector<16x128xf32> to vector<16xf32>
    %70 = vector.shape_cast %69 : vector<16xf32> to vector<16x1xf32>
    %cst_34 = arith.constant 3.125000e-02 : f32
    %71 = vector.broadcast %cst_34 : f32 to vector<16x1xf32>
    %72 = arith.mulf %70, %71 : vector<16x1xf32>
    %73 = arith.mulf %67, %67 : vector<16x1xf32>
    %74 = arith.subf %72, %73 : vector<16x1xf32>
    %cst_35 = arith.constant 0.000000e+00 : f32
    %75 = vector.broadcast %cst_35 : f32 to vector<16x1xf32>
    %76 = arith.maximumf %74, %75 : vector<16x1xf32>
    %77 = vector.broadcast %67 : vector<16x1xf32> to vector<16x128xf32>
    %78 = arith.subf %56, %77 : vector<16x128xf32>
    %cst_36 = arith.constant 9.99999974E-6 : f32
    %79 = vector.broadcast %cst_36 : f32 to vector<16x1xf32>
    %80 = arith.addf %76, %79 : vector<16x1xf32>
    %81 = math.rsqrt %80 : vector<16x1xf32>
    %82 = vector.broadcast %81 : vector<16x1xf32> to vector<16x128xf32>
    %83 = arith.mulf %78, %82 : vector<16x128xf32>
    %84 = vector.broadcast %2 : vector<1x128xf32> to vector<16x128xf32>
    %85 = arith.mulf %83, %84 : vector<16x128xf32>
    %86 = vector.broadcast %3 : vector<1x128xf32> to vector<16x128xf32>
    %87 = arith.addf %85, %86 : vector<16x128xf32>
    %c0_37 = arith.constant 0 : index
    %c0_38 = arith.constant 0 : index
    %88 = vector.load %arg8[%c0_37, %c0_38] : memref<16x128xf32, #tpu.memory_space<vmem>>, vector<16x128xf32>
    tpu.vector_store %arg8[%c0_37, %c0_38], %87 {strides = array<i32>} : memref<16x128xf32, #tpu.memory_space<vmem>>, vector<16x128xf32>,
    return
  }
  func.func @transform_0(%arg0: i32) -> (i32, i32) {
    %c0_i32 = arith.constant 0 : i32
    %c0_i32_0 = arith.constant 0 : i32
    return %arg0, %c0_i32 : i32, i32
  }
  func.func @transform_1(%arg0: i32) -> (i32, i32) {
    %c0_i32 = arith.constant 0 : i32
    %c0_i32_0 = arith.constant 0 : i32
    %c0_i32_1 = arith.constant 0 : i32
    return %c0_i32, %c0_i32_0 : i32, i32
  }
  func.func @transform_2(%arg0: i32) -> (i32, i32) {
    %c0_i32 = arith.constant 0 : i32
    %c0_i32_0 = arith.constant 0 : i32
    %c0_i32_1 = arith.constant 0 : i32
    return %c0_i32, %c0_i32_0 : i32, i32
  }
  func.func @transform_3(%arg0: i32) -> (i32, i32) {
    %c0_i32 = arith.constant 0 : i32
    %c0_i32_0 = arith.constant 0 : i32
    %c0_i32_1 = arith.constant 0 : i32
    return %c0_i32, %c0_i32_0 : i32, i32
  }
  func.func @transform_4(%arg0: i32) -> (i32, i32) {
    %c0_i32 = arith.constant 0 : i32
    %c0_i32_0 = arith.constant 0 : i32
    %c0_i32_1 = arith.constant 0 : i32
    return %c0_i32, %c0_i32_0 : i32, i32
  }
  func.func @transform_5(%arg0: i32) -> (i32, i32) {
    %c0_i32 = arith.constant 0 : i32
    %c0_i32_0 = arith.constant 0 : i32
    %c0_i32_1 = arith.constant 0 : i32
    return %c0_i32, %c0_i32_0 : i32, i32
  }
  func.func @transform_6(%arg0: i32) -> (i32, i32) {
    %c0_i32 = arith.constant 0 : i32
    %c0_i32_0 = arith.constant 0 : i32
    %c0_i32_1 = arith.constant 0 : i32
    return %c0_i32, %c0_i32_0 : i32, i32
  }
  func.func @transform_7(%arg0: i32) -> (i32, i32) {
    %c0_i32 = arith.constant 0 : i32
    %c0_i32_0 = arith.constant 0 : i32
    return %arg0, %c0_i32 : i32, i32
  }
}

module attributes {stable_mosaic.version = 11 : i64} {
  func.func @alignment_kernel(%arg0: i32, %arg1: memref<16x128xf32, #tpu.memory_space<vmem>>, %arg2: memref<128x128xf32, #tpu.memory_space<vmem>>, %arg3: memref<1x128xf32, #tpu.memory_space<vmem>>, %arg4: memref<128x128xf32, #tpu.memory_space<vmem>>, %arg5: memref<1x128xf32, #tpu.memory_space<vmem>>, %arg6: memref<1x128xf32, #tpu.memory_space<vmem>>, %arg7: memref<1x128xf32, #tpu.memory_space<vmem>>, %arg8: memref<16x128xf32, #tpu.memory_space<vmem>>) attributes {dimension_semantics = [#tpu.dimension_semantics<parallel>], iteration_bounds = array<i64: 1>, scalar_prefetch = 0 : i64, scratch_operands = 0 : i64, tpu.core_type = #tpu.core_type<tc>, window_params = [{transform_indices = @transform_0, window_bounds = array<i64: 16, 128>}, {pipeline_mode = #tpu.pipeline_mode<synchronous>, transform_indices = @transform_1, window_bounds = array<i64: 128, 128>}, {pipeline_mode = #tpu.pipeline_mode<synchronous>, transform_indices = @transform_2, window_bounds = array<i64: 1, 128>}, {pipeline_mode = #tpu.pipeline_mode<synchronous>, transform_indices = @transform_3, window_bounds = array<i64: 128, 128>}, {pipeline_mode = #tpu.pipeline_mode<synchronous>, transform_indices = @transform_4, window_bounds = array<i64: 1, 128>}, {pipeline_mode = #tpu.pipeline_mode<synchronous>, transform_indices = @transform_5, window_bounds = array<i64: 1, 128>}, {pipeline_mode = #tpu.pipeline_mode<synchronous>, transform_indices = @transform_6, window_bounds = array<i64: 1, 128>}, {transform_indices = @transform_7, window_bounds = array<i64: 16, 128>}]} {
    %c0 = arith.constant 0 : index
    %c0_0 = arith.constant 0 : index
    %0 = vector.load %arg3[%c0, %c0_0] : memref<1x128xf32, #tpu.memory_space<vmem>>, vector<1x128xf32>
    %c0_1 = arith.constant 0 : index
    %c0_2 = arith.constant 0 : index
    %1 = vector.load %arg5[%c0_1, %c0_2] : memref<1x128xf32, #tpu.memory_space<vmem>>, vector<1x128xf32>
    %c0_3 = arith.constant 0 : index
    %c0_4 = arith.constant 0 : index
    %2 = vector.load %arg6[%c0_3, %c0_4] : memref<1x128xf32, #tpu.memory_space<vmem>>, vector<1x128xf32>
    %c0_5 = arith.constant 0 : index
    %c0_6 = arith.constant 0 : index
    %3 = vector.load %arg7[%c0_5, %c0_6] : memref<1x128xf32, #tpu.memory_space<vmem>>, vector<1x128xf32>
    %c0_7 = arith.constant 0 : index
    %c0_8 = arith.constant 0 : index
    %4 = vector.load %arg1[%c0_7, %c0_8] : memref<16x128xf32, #tpu.memory_space<vmem>>, vector<16x128xf32>
    %c0_9 = arith.constant 0 : index
    %c0_10 = arith.constant 0 : index
    %5 = vector.load %arg2[%c0_9, %c0_10] : memref<128x128xf32, #tpu.memory_space<vmem>>, vector<128x128xf32>
    %cst = arith.constant dense<0.000000e+00> : vector<16x128xf32>
    %6 = tpu.matmul %4, %5, %cst {dimension_numbers = #tpu.dot_dimension_numbers<[1], [0], [0], [1], [0, 0, 1, 1], [], []>} : vector<16x128xf32>, vector<128x128xf32>, vector<16x128xf32> -> vector<16x128xf32>
    %7 = vector.broadcast %0 : vector<1x128xf32> to vector<16x128xf32>
    %8 = arith.addf %6, %7 : vector<16x128xf32>
    %cst_11 = arith.constant 5.000000e-01 : f32
    %9 = vector.broadcast %cst_11 : f32 to vector<16x128xf32>
    %10 = arith.mulf %9, %8 : vector<16x128xf32>
    %cst_12 = arith.constant 0.707106769 : f32
    %11 = vector.broadcast %cst_12 : f32 to vector<16x128xf32>
    %12 = arith.mulf %8, %11 : vector<16x128xf32>
    %cst_13 = arith.constant 0.000000e+00 : f32
    %13 = vector.broadcast %cst_13 : f32 to vector<16x128xf32>
    %14 = arith.cmpf oge, %12, %13 : vector<16x128xf32>
    %cst_14 = arith.constant 1.000000e+00 : f32
    %cst_15 = arith.constant -1.000000e+00 : f32
    %15 = vector.broadcast %cst_14 : f32 to vector<16x128xf32>
    %16 = vector.broadcast %cst_15 : f32 to vector<16x128xf32>
    %17 = arith.select %14, %15, %16 : vector<16x128xi1>, vector<16x128xf32>
    %18 = math.absf %12 : vector<16x128xf32>
    %cst_16 = arith.constant 0.327591091 : f32
    %19 = vector.broadcast %cst_16 : f32 to vector<16x128xf32>
    %20 = arith.mulf %19, %18 : vector<16x128xf32>
    %cst_17 = arith.constant 1.000000e+00 : f32
    %21 = vector.broadcast %cst_17 : f32 to vector<16x128xf32>
    %22 = arith.addf %21, %20 : vector<16x128xf32>
    %23 = tpu.reciprocal %22 {approx = true} : vector<16x128xf32> -> vector<16x128xf32>
    %24 = arith.mulf %22, %23 : vector<16x128xf32>
    %cst_18 = arith.constant 2.000000e+00 : f32
    %25 = vector.broadcast %cst_18 : f32 to vector<16x128xf32>
    %26 = arith.subf %25, %24 : vector<16x128xf32>
    %27 = arith.mulf %23, %26 : vector<16x128xf32>
    %cst_19 = arith.constant 1.06140542 : f32
    %28 = vector.broadcast %cst_19 : f32 to vector<16x128xf32>
    %29 = arith.mulf %28, %27 : vector<16x128xf32>
    %cst_20 = arith.constant -1.45315206 : f32
    %30 = vector.broadcast %cst_20 : f32 to vector<16x128xf32>
    %31 = arith.addf %29, %30 : vector<16x128xf32>
    %32 = arith.mulf %31, %27 : vector<16x128xf32>
    %cst_21 = arith.constant 1.42141378 : f32
    %33 = vector.broadcast %cst_21 : f32 to vector<16x128xf32>
    %34 = arith.addf %32, %33 : vector<16x128xf32>
    %35 = arith.mulf %34, %27 : vector<16x128xf32>
    %cst_22 = arith.constant -0.284496725 : f32
    %36 = vector.broadcast %cst_22 : f32 to vector<16x128xf32>
    %37 = arith.addf %35, %36 : vector<16x128xf32>
    %38 = arith.mulf %37, %27 : vector<16x128xf32>
    %cst_23 = arith.constant 0.254829586 : f32
    %39 = vector.broadcast %cst_23 : f32 to vector<16x128xf32>
    %40 = arith.addf %38, %39 : vector<16x128xf32>
    %41 = arith.mulf %40, %27 : vector<16x128xf32>
    %cst_24 = arith.constant 0.000000e+00 : f32
    %42 = vector.broadcast %cst_24 : f32 to vector<16x128xf32>
    %43 = arith.subf %42, %18 : vector<16x128xf32>
    %44 = arith.mulf %43, %18 : vector<16x128xf32>
    %45 = math.exp %44 : vector<16x128xf32>
    %46 = arith.mulf %41, %45 : vector<16x128xf32>
    %cst_25 = arith.constant 1.000000e+00 : f32
    %47 = vector.broadcast %cst_25 : f32 to vector<16x128xf32>
    %48 = arith.subf %47, %46 : vector<16x128xf32>
    %49 = arith.mulf %17, %48 : vector<16x128xf32>
    %cst_26 = arith.constant 1.000000e+00 : f32
    %50 = vector.broadcast %cst_26 : f32 to vector<16x128xf32>
    %51 = arith.addf %50, %49 : vector<16x128xf32>
    %52 = arith.mulf %10, %51 : vector<16x128xf32>
    %c0_27 = arith.constant 0 : index
    %c0_28 = arith.constant 0 : index
    %53 = vector.load %arg4[%c0_27, %c0_28] : memref<128x128xf32, #tpu.memory_space<vmem>>, vector<128x128xf32>
    %cst_29 = arith.constant dense<0.000000e+00> : vector<16x128xf32>
    %54 = tpu.matmul %52, %53, %cst_29 {dimension_numbers = #tpu.dot_dimension_numbers<[1], [0], [0], [1], [0, 0, 1, 1], [], []>} : vector<16x128xf32>, vector<128x128xf32>, vector<16x128xf32> -> vector<16x128xf32>
    %55 = vector.broadcast %1 : vector<1x128xf32> to vector<16x128xf32>
    %56 = arith.addf %54, %55 : vector<16x128xf32>
    %57 = tpu.iota {dimensions = array<i32: 1>} : vector<1x128xi32>
    %c32_i32 = arith.constant 32 : i32
    %58 = vector.broadcast %c32_i32 : i32 to vector<1x128xi32>
    %59 = arith.cmpi slt, %57, %58 : vector<1x128xi32>
    %cst_30 = arith.constant 0.000000e+00 : f32
    %60 = vector.shape_cast %59 : vector<1x128xi1> to vector<1x128xi1>
    %61 = vector.broadcast %60 : vector<1x128xi1> to vector<16x128xi1>
    %62 = vector.broadcast %cst_30 : f32 to vector<16x128xf32>
    %63 = arith.select %61, %56, %62 : vector<16x128xi1>, vector<16x128xf32>
    %cst_31 = arith.constant dense<0.000000e+00> : vector<16xf32>
    %64 = vector.multi_reduction <add>, %63, %cst_31 [1] : vector<16x128xf32> to vector<16xf32>
    %65 = vector.shape_cast %64 : vector<16xf32> to vector<16x1xf32>
    %cst_32 = arith.constant 3.125000e-02 : f32
    %66 = vector.broadcast %cst_32 : f32 to vector<16x1xf32>
    %67 = arith.mulf %65, %66 : vector<16x1xf32>
    %68 = arith.mulf %63, %63 : vector<16x128xf32>
    %cst_33 = arith.constant dense<0.000000e+00> : vector<16xf32>
    %69 = vector.multi_reduction <add>, %68, %cst_33 [1] : vector<16x128xf32> to vector<16xf32>
    %70 = vector.shape_cast %69 : vector<16xf32> to vector<16x1xf32>
    %cst_34 = arith.constant 3.125000e-02 : f32
    %71 = vector.broadcast %cst_34 : f32 to vector<16x1xf32>
    %72 = arith.mulf %70, %71 : vector<16x1xf32>
    %73 = arith.mulf %67, %67 : vector<16x1xf32>
    %74 = arith.subf %72, %73 : vector<16x1xf32>
    %cst_35 = arith.constant 0.000000e+00 : f32
    %75 = vector.broadcast %cst_35 : f32 to vector<16x1xf32>
    %76 = arith.maximumf %74, %75 : vector<16x1xf32>
    %77 = vector.broadcast %67 : vector<16x1xf32> to vector<16x128xf32>
    %78 = arith.subf %56, %77 : vector<16x128xf32>
    %cst_36 = arith.constant 9.99999974E-6 : f32
    %79 = vector.broadcast %cst_36 : f32 to vector<16x1xf32>
    %80 = arith.addf %76, %79 : vector<16x1xf32>
    %81 = math.rsqrt %80 : vector<16x1xf32>
    %82 = vector.broadcast %81 : vector<16x1xf32> to vector<16x128xf32>
    %83 = arith.mulf %78, %82 : vector<16x128xf32>
    %84 = vector.broadcast %2 : vector<1x128xf32> to vector<16x128xf32>
    %85 = arith.mulf %83, %84 : vector<16x128xf32>
    %86 = vector.broadcast %3 : vector<1x128xf32> to vector<16x128xf32>
    %87 = arith.addf %85, %86 : vector<16x128xf32>
    %c0_37 = arith.constant 0 : index
    %c0_38 = arith.constant 0 : index
    %88 = vector.load %arg8[%c0_37, %c0_38] : memref<16x128xf32, #tpu.memory_space<vmem>>, vector<16x128xf32>
    tpu.vector_store %arg8[%c0_37, %c0_38], %87 {strides = array<i32>} : memref<16x128xf32, #tpu.memory_space<vmem>>, vector<16x128xf32>,
    return
  }
  func.func @transform_0(%arg0: i32) -> (i32, i32) {
    %c0_i32 = arith.constant 0 : i32
    %c0_i32_0 = arith.constant 0 : i32
    return %arg0, %c0_i32 : i32, i32
  }
  func.func @transform_1(%arg0: i32) -> (i32, i32) {
    %c0_i32 = arith.constant 0 : i32
    %c0_i32_0 = arith.constant 0 : i32
    %c0_i32_1 = arith.constant 0 : i32
    return %c0_i32, %c0_i32_0 : i32, i32
  }
  func.func @transform_2(%arg0: i32) -> (i32, i32) {
    %c0_i32 = arith.constant 0 : i32
    %c0_i32_0 = arith.constant 0 : i32
    %c0_i32_1 = arith.constant 0 : i32
    return %c0_i32, %c0_i32_0 : i32, i32
  }
  func.func @transform_3(%arg0: i32) -> (i32, i32) {
    %c0_i32 = arith.constant 0 : i32
    %c0_i32_0 = arith.constant 0 : i32
    %c0_i32_1 = arith.constant 0 : i32
    return %c0_i32, %c0_i32_0 : i32, i32
  }
  func.func @transform_4(%arg0: i32) -> (i32, i32) {
    %c0_i32 = arith.constant 0 : i32
    %c0_i32_0 = arith.constant 0 : i32
    %c0_i32_1 = arith.constant 0 : i32
    return %c0_i32, %c0_i32_0 : i32, i32
  }
  func.func @transform_5(%arg0: i32) -> (i32, i32) {
    %c0_i32 = arith.constant 0 : i32
    %c0_i32_0 = arith.constant 0 : i32
    %c0_i32_1 = arith.constant 0 : i32
    return %c0_i32, %c0_i32_0 : i32, i32
  }
  func.func @transform_6(%arg0: i32) -> (i32, i32) {
    %c0_i32 = arith.constant 0 : i32
    %c0_i32_0 = arith.constant 0 : i32
    %c0_i32_1 = arith.constant 0 : i32
    return %c0_i32, %c0_i32_0 : i32, i32
  }
  func.func @transform_7(%arg0: i32) -> (i32, i32) {
    %c0_i32 = arith.constant 0 : i32
    %c0_i32_0 = arith.constant 0 : i32
    return %arg0, %c0_i32 : i32, i32
  }
}

</mosaic_0001>

<llo_original>
// kernel: tpu_custom_call.1
$region0: #{tpu_custom_call.1}
  #allocation0 [shape = 'u32[]', space=smem, size = 0x4, offset = 0x4, fixed_abs, tag = 'smem constant byte address 0x4 - core index']
  #allocation1 [shape = 'u32[144,128]{1,0:T(1,128)}', space=vmem, size = 0x12000, scoped, tag = 'internal scratch']
  %s0 = inlined_call_operand.hbm [shape: f32[16,128], index: 0, kind: input, shape index: {}]
  %s1 = inlined_call_operand.hbm [shape: f32[128,128], index: 1, kind: input, shape index: {}]
  %s2 = inlined_call_operand.vmem [shape: f32[1,128], index: 2, kind: input, shape index: {}]
  %s3 = inlined_call_operand.hbm [shape: f32[128,128], index: 3, kind: input, shape index: {}]
  %s4 = inlined_call_operand.vmem [shape: f32[1,128], index: 4, kind: input, shape index: {}]
  %s5 = inlined_call_operand.vmem [shape: f32[1,128], index: 5, kind: input, shape index: {}]
  %s6 = inlined_call_operand.vmem [shape: f32[1,128], index: 6, kind: input, shape index: {}]
  %s7 = inlined_call_operand.hbm [shape: f32[16,128], index: 7, kind: output, shape index: {}]
  %s8 = sld [smem:[#allocation0]]
  $region50: #{tpu_custom_call.1} parent=0
    _
  %s10 = ssub.s32 1, %s8
  %s11 = scalar_select 0, %s10, %s8
  $region1: #{tpu_custom_call.1} parent=0
    #allocation2 [shape = 'u8[8192]{0}', space=vmem, size = 0x2000, scoped, tag = 'input window, operand 0, single buffered']
    #allocation3 [shape = 's32[1]{0}', space=sflag, size = 0x4, scoped, tag = 'scoped memory for tpu_custom_call.1']
    #allocation4 [shape = 's32[1]{0}', space=sflag, size = 0x4, scoped, tag = 'scoped memory for tpu_custom_call.1']
    #allocation5 [shape = 'u8[65536]{0}', space=vmem, size = 0x10000, scoped, tag = 'input window, operand 1, single buffered']
    #allocation6 [shape = 's32[1]{0}', space=sflag, size = 0x4, scoped, tag = 'scoped memory for tpu_custom_call.1']
    #allocation7 [shape = 'u8[65536]{0}', space=vmem, size = 0x10000, scoped, tag = 'input window, operand 3, single buffered']
    #allocation8 [shape = 'u8[8192]{0}', space=vmem, size = 0x2000, scoped, tag = 'output window, operand 0, single buffered']
    %12 = vsyncpa [#allocation3], 0
    %13 = vsyncpa [#allocation6], 0
    %14 = vsyncpa [#allocation4], 0
    // Predicated region
    $region2: #{tpu_custom_call.1} parent=1 // pred_check
      _
    $region3: #{tpu_custom_call.1} parent=1 // pred_check_branch
      %16 = sbr.rel (0) target = $region5
    $region4: #{tpu_custom_call.1} parent=1 // pred_region
      %s18 = ssub.s32 256, 256
      %19 = vsyncadd [#allocation3], %s18
      %s20 = sshll.u32 [#allocation2], 4
      %s21 = int_to_ptr.vmem [resolvable:$true] %s20
      %26 = dma.hbm_to_vmem [thread:$0]  %s0, 256, %s21, [#allocation3], 128, 128, 8
    $region5: #{tpu_custom_call.1} parent=1 // pred_fallthru
      _
    // Predicated region
    $region6: #{tpu_custom_call.1} parent=1 // pred_check
      _
    $region7: #{tpu_custom_call.1} parent=1 // pred_check_branch
      %28 = sbr.rel (0) target = $region9
    $region8: #{tpu_custom_call.1} parent=1 // pred_region
      %s30 = ssub.s32 2048, 2048
      %31 = vsyncadd [#allocation6], %s30
      %s32 = sshll.u32 [#allocation5], 4
      %s33 = int_to_ptr.vmem [resolvable:$true] %s32
      %38 = dma.hbm_to_vmem [thread:$0]  %s1, 2048, %s33, [#allocation6], 128, 128, 8
    $region9: #{tpu_custom_call.1} parent=1 // pred_fallthru
      _
    // Predicated region
    $region10: #{tpu_custom_call.1} parent=1 // pred_check
      _
    $region11: #{tpu_custom_call.1} parent=1 // pred_check_branch
      %40 = sbr.rel (0) target = $region13
    $region12: #{tpu_custom_call.1} parent=1 // pred_region
      _
    $region13: #{tpu_custom_call.1} parent=1 // pred_fallthru
      _
    // Predicated region
    $region14: #{tpu_custom_call.1} parent=1 // pred_check
      _
    $region15: #{tpu_custom_call.1} parent=1 // pred_check_branch
      %42 = sbr.rel (0) target = $region17
    $region16: #{tpu_custom_call.1} parent=1 // pred_region
      %s44 = ssub.s32 2048, 2048
      %45 = vsyncadd [#allocation6], %s44
      %s46 = sshll.u32 [#allocation7], 4
      %s47 = int_to_ptr.vmem [resolvable:$true] %s46
      %52 = dma.hbm_to_vmem [thread:$0]  %s3, 2048, %s47, [#allocation6], 128, 128, 8
    $region17: #{tpu_custom_call.1} parent=1 // pred_fallthru
      _
    // Predicated region
    $region18: #{tpu_custom_call.1} parent=1 // pred_check
      _
    $region19: #{tpu_custom_call.1} parent=1 // pred_check_branch
      %54 = sbr.rel (0) target = $region21
    $region20: #{tpu_custom_call.1} parent=1 // pred_region
      _
    $region21: #{tpu_custom_call.1} parent=1 // pred_fallthru
      _
    // Predicated region
    $region22: #{tpu_custom_call.1} parent=1 // pred_check
      _
    $region23: #{tpu_custom_call.1} parent=1 // pred_check_branch
      %56 = sbr.rel (0) target = $region25
    $region24: #{tpu_custom_call.1} parent=1 // pred_region
      _
    $region25: #{tpu_custom_call.1} parent=1 // pred_fallthru
      _
    // Predicated region
    $region26: #{tpu_custom_call.1} parent=1 // pred_check
      _
    $region27: #{tpu_custom_call.1} parent=1 // pred_check_branch
      %58 = sbr.rel (0) target = $region29
    $region28: #{tpu_custom_call.1} parent=1 // pred_region
      _
    $region29: #{tpu_custom_call.1} parent=1 // pred_fallthru
      _
    // Predicated region
    $region30: #{tpu_custom_call.1} parent=1 // pred_check
      _
    $region31: #{tpu_custom_call.1} parent=1 // pred_check_branch
      %60 = sbr.rel (0) target = $region33
    $region32: #{tpu_custom_call.1} parent=1 // pred_region
      %61 = dma.done [#allocation3], 256
    $region33: #{tpu_custom_call.1} parent=1 // pred_fallthru
      _
    // Predicated region
    $region34: #{tpu_custom_call.1} parent=1 // pred_check
      _
    $region35: #{tpu_custom_call.1} parent=1 // pred_check_branch
      %63 = sbr.rel (0) target = $region37
    $region36: #{tpu_custom_call.1} parent=1 // pred_region
      %64 = dma.done [#allocation6], 2048
    $region37: #{tpu_custom_call.1} parent=1 // pred_fallthru
      _
    // Predicated region
    $region38: #{tpu_custom_call.1} parent=1 // pred_check
      _
    $region39: #{tpu_custom_call.1} parent=1 // pred_check_branch
      %66 = sbr.rel (0) target = $region41
    $region40: #{tpu_custom_call.1} parent=1 // pred_region
      %67 = dma.done [#allocation6], 2048
    $region41: #{tpu_custom_call.1} parent=1 // pred_fallthru
      _
    %v68 = vld [vmem:[%s2] sm:$0x1]
    %v69 = vld [vmem:[%s4] sm:$0x1]
    %v70 = vld [vmem:[%s5] sm:$0x1]
    %v71 = vld [vmem:[%s6] sm:$0x1]
    %v72 = vld [vmem:[#allocation2] sm:$0xff]
    %v73 = vld [vmem:[#allocation2 + $0x8] sm:$0xff]
    %v74 = vld [vmem:[#allocation5] sm:$0xff]
    %v75 = vld [vmem:[#allocation5 + $0x8] sm:$0xff]
    %v76 = vld [vmem:[#allocation5 + $0x10] sm:$0xff]
    %v77 = vld [vmem:[#allocation5 + $0x18] sm:$0xff]
    %v78 = vld [vmem:[#allocation5 + $0x20] sm:$0xff]
    %v79 = vld [vmem:[#allocation5 + $0x28] sm:$0xff]
    %v80 = vld [vmem:[#allocation5 + $0x30] sm:$0xff]
    %v81 = vld [vmem:[#allocation5 + $0x38] sm:$0xff]
    %v82 = vld [vmem:[#allocation5 + $0x40] sm:$0xff]
    %v83 = vld [vmem:[#allocation5 + $0x48] sm:$0xff]
    %v84 = vld [vmem:[#allocation5 + $0x50] sm:$0xff]
    %v85 = vld [vmem:[#allocation5 + $0x58] sm:$0xff]
    %v86 = vld [vmem:[#allocation5 + $0x60] sm:$0xff]
    %v87 = vld [vmem:[#allocation5 + $0x68] sm:$0xff]
    %v88 = vld [vmem:[#allocation5 + $0x70] sm:$0xff]
    %v89 = vld [vmem:[#allocation5 + $0x78] sm:$0xff]
    %v91 = vlaneseq
    %v92 = vshrl.u32 %v91, 7
    %v93 = vsub.s32 0, %v92
    %v94 = vrot.slane %v68, %v93
    %96 = vmatprep.subr.mxu0 0.0
    %97 = vmatpush1.msra.mxu0 %v74
    %98 = vmatprep.subr.mxu0 0.0
    %99 = vmatpush1.msra.mxu0 %v75
    %100 = vmatprep.subr.mxu0 0.0
    %101 = vmatpush1.msra.mxu0 %v76
    %102 = vmatprep.subr.mxu0 0.0
    %103 = vmatpush1.msra.mxu0 %v77
    %104 = vmatprep.subr.mxu0 0.0
    %105 = vmatpush1.msra.mxu0 %v78
    %106 = vmatprep.subr.mxu0 0.0
    %107 = vmatpush1.msra.mxu0 %v79
    %108 = vmatprep.subr.mxu0 0.0
    %109 = vmatpush1.msra.mxu0 %v80
    %110 = vmatprep.subr.mxu0 0.0
    %111 = vmatpush1.msra.mxu0 %v81
    %112 = vmatprep.subr.mxu0 0.0
    %113 = vmatpush1.msra.mxu0 %v82
    %114 = vmatprep.subr.mxu0 0.0
    %115 = vmatpush1.msra.mxu0 %v83
    %116 = vmatprep.subr.mxu0 0.0
    %117 = vmatpush1.msra.mxu0 %v84
    %118 = vmatprep.subr.mxu0 0.0
    %119 = vmatpush1.msra.mxu0 %v85
    %120 = vmatprep.subr.mxu0 0.0
    %121 = vmatpush1.msra.mxu0 %v86
    %122 = vmatprep.subr.mxu0 0.0
    %123 = vmatpush1.msra.mxu0 %v87
    %124 = vmatprep.subr.mxu0 0.0
    %125 = vmatpush1.msra.mxu0 %v88
    %126 = vmatprep.subr.mxu0 0.0
    %127 = vmatpush1.msra.mxu0 %v89
    %128 = vmatprep.subr.mxu0 0.0
    %129 = vmatpush1.msra.mxu0 0.0
    %130 = vmatprep.subr.mxu0 0.0
    %131 = vmatpush1.msra.mxu0 0.0
    %132 = vmatprep.subr.mxu0 0.0
    %133 = vmatpush1.msra.mxu0 0.0
    %134 = vmatprep.subr.mxu0 0.0
    %135 = vmatpush1.msra.mxu0 0.0
    %136 = vmatprep.subr.mxu0 0.0
    %137 = vmatpush1.msra.mxu0 0.0
    %138 = vmatprep.subr.mxu0 0.0
    %139 = vmatpush1.msra.mxu0 0.0
    %140 = vmatprep.subr.mxu0 0.0
    %141 = vmatpush1.msra.mxu0 0.0
    %142 = vmatprep.subr.mxu0 0.0
    %143 = vmatpush1.msra.mxu0 0.0
    %144 = vmatprep.subr.mxu0 0.0
    %145 = vmatpush1.msra.mxu0 0.0
    %146 = vmatprep.subr.mxu0 0.0
    %147 = vmatpush1.msra.mxu0 0.0
    %148 = vmatprep.subr.mxu0 0.0
    %149 = vmatpush1.msra.mxu0 0.0
    %150 = vmatprep.subr.mxu0 0.0
    %151 = vmatpush1.msra.mxu0 0.0
    %152 = vmatprep.subr.mxu0 0.0
    %153 = vmatpush1.msra.mxu0 0.0
    %154 = vmatprep.subr.mxu0 0.0
    %155 = vmatpush1.msra.mxu0 0.0
    %156 = vmatprep.subr.mxu0 0.0
    %157 = vmatpush1.msra.mxu0 0.0
    %158 = vmatprep.subr.mxu0 0.0
    %159 = vmatpush1.msra.mxu0 0.0
    %160 = vmatprep.mubr.f32.mxu0 0.0
    %161 = vmatmul.mubr.f32.gmra.mrb[0].mxu0 %v72
    %v162 = vpop.f32.mrb[0].mxu0
    %v163 = vadd.f32 %v94, %v162
    %v164 = vpop.f32.mrb[0].mxu0
    %165 = vmatprep.mubr.f32.mxu0 0.0
    %166 = vmatmul.mubr.f32.gmra.mrb[0].mxu0 %v73
    %v167 = vpop.f32.mrb[0].mxu0
    %v168 = vadd.f32 %v94, %v167
    %v169 = vpop.f32.mrb[0].mxu0
    %170 = vdwg.mxu0
    %v171 = vmul.f32 %v163, 0.5
    %v172 = vmul.f32 %v168, 0.5
    %v173 = vmul.f32 %v163, 0.70710677
    %v174 = vmul.f32 %v168, 0.70710677
    %vm175 = vcmp.ge.f32.partialorder %v173, 0.0
    %vm176 = vcmp.ge.f32.partialorder %v174, 0.0
    %v177 = vsel %vm175, 1.0, -1.0
    %v178 = vsel %vm176, 1.0, -1.0
    %v179 = vand.u32 2147483647, %v173
    %v180 = vand.u32 2147483647, %v174
    %v181 = vmul.f32 %v179, 0.3275911
    %v182 = vmul.f32 %v180, 0.3275911
    %v183 = vadd.f32 %v181, 1.0
    %v184 = vadd.f32 %v182, 1.0
    %v185 = vrcp.pop %v183
    %v186 = vrcp.pop %v184
    %v187 = vmul.f32 %v183, %v185
    %v188 = vmul.f32 %v184, %v186
    %v189 = vsub.f32 2.0, %v187
    %v190 = vsub.f32 2.0, %v188
    %v191 = vmul.f32 %v185, %v189
    %v192 = vmul.f32 %v186, %v190
    %v193 = vmul.f32 %v191, 1.0614054
    %v194 = vmul.f32 %v192, 1.0614054
    %v195 = vadd.f32 %v193, -1.4531521
    %v196 = vadd.f32 %v194, -1.4531521
    %v197 = vmul.f32 %v195, %v191
    %v198 = vmul.f32 %v196, %v192
    %v199 = vadd.f32 %v197, 1.4214138
    %v200 = vadd.f32 %v198, 1.4214138
    %v201 = vmul.f32 %v199, %v191
    %v202 = vmul.f32 %v200, %v192
    %v203 = vadd.f32 %v201, -0.28449672
    %v204 = vadd.f32 %v202, -0.28449672
    %v205 = vmul.f32 %v203, %v191
    %v206 = vmul.f32 %v204, %v192
    %v207 = vadd.f32 %v205, 0.2548296
    %v208 = vadd.f32 %v206, 0.2548296
    %v209 = vmul.f32 %v207, %v191
    %v210 = vmul.f32 %v208, %v192
    %v211 = vsub.f32 0.0, %v179
    %v212 = vsub.f32 0.0, %v180
    %v213 = vmul.f32 %v211, %v179
    %v214 = vmul.f32 %v212, %v180
    %v215 = vmul.f32 %v213, 1.442695
    %v216 = vpow.pop %v215
    %v217 = vmul.f32 %v214, 1.442695
    %v218 = vpow.pop %v217
    %v219 = vmul.f32 %v209, %v216
    %v220 = vmul.f32 %v210, %v218
    %v221 = vsub.f32 1.0, %v219
    %v222 = vsub.f32 1.0, %v220
    %v223 = vmul.f32 %v177, %v221
    %v224 = vmul.f32 %v178, %v222
    %v225 = vadd.f32 %v223, 1.0
    %v226 = vadd.f32 %v224, 1.0
    %v227 = vmul.f32 %v171, %v225
    %v228 = vmul.f32 %v172, %v226
    %v229 = vld [vmem:[#allocation7] sm:$0xff]
    %v230 = vld [vmem:[#allocation7 + $0x8] sm:$0xff]
    %v231 = vld [vmem:[#allocation7 + $0x10] sm:$0xff]
    %v232 = vld [vmem:[#allocation7 + $0x18] sm:$0xff]
    %v233 = vld [vmem:[#allocation7 + $0x20] sm:$0xff]
    %v234 = vld [vmem:[#allocation7 + $0x28] sm:$0xff]
    %v235 = vld [vmem:[#allocation7 + $0x30] sm:$0xff]
    %v236 = vld [vmem:[#allocation7 + $0x38] sm:$0xff]
    %v237 = vld [vmem:[#allocation7 + $0x40] sm:$0xff]
    %v238 = vld [vmem:[#allocation7 + $0x48] sm:$0xff]
    %v239 = vld [vmem:[#allocation7 + $0x50] sm:$0xff]
    %v240 = vld [vmem:[#allocation7 + $0x58] sm:$0xff]
    %v241 = vld [vmem:[#allocation7 + $0x60] sm:$0xff]
    %v242 = vld [vmem:[#allocation7 + $0x68] sm:$0xff]
    %v243 = vld [vmem:[#allocation7 + $0x70] sm:$0xff]
    %v244 = vld [vmem:[#allocation7 + $0x78] sm:$0xff]
    %v246 = vlaneseq
    %v247 = vshrl.u32 %v246, 7
    %v248 = vsub.s32 0, %v247
    %v249 = vrot.slane %v69, %v248
    %251 = vmatprep.subr.mxu0 0.0
    %252 = vmatpush1.msra.mxu0 %v229
    %253 = vmatprep.subr.mxu0 0.0
    %254 = vmatpush1.msra.mxu0 %v230
    %255 = vmatprep.subr.mxu0 0.0
    %256 = vmatpush1.msra.mxu0 %v231
    %257 = vmatprep.subr.mxu0 0.0
    %258 = vmatpush1.msra.mxu0 %v232
    %259 = vmatprep.subr.mxu0 0.0
    %260 = vmatpush1.msra.mxu0 %v233
    %261 = vmatprep.subr.mxu0 0.0
    %262 = vmatpush1.msra.mxu0 %v234
    %263 = vmatprep.subr.mxu0 0.0
    %264 = vmatpush1.msra.mxu0 %v235
    %265 = vmatprep.subr.mxu0 0.0
    %266 = vmatpush1.msra.mxu0 %v236
    %267 = vmatprep.subr.mxu0 0.0
    %268 = vmatpush1.msra.mxu0 %v237
    %269 = vmatprep.subr.mxu0 0.0
    %270 = vmatpush1.msra.mxu0 %v238
    %271 = vmatprep.subr.mxu0 0.0
    %272 = vmatpush1.msra.mxu0 %v239
    %273 = vmatprep.subr.mxu0 0.0
    %274 = vmatpush1.msra.mxu0 %v240
    %275 = vmatprep.subr.mxu0 0.0
    %276 = vmatpush1.msra.mxu0 %v241
    %277 = vmatprep.subr.mxu0 0.0
    %278 = vmatpush1.msra.mxu0 %v242
    %279 = vmatprep.subr.mxu0 0.0
    %280 = vmatpush1.msra.mxu0 %v243
    %281 = vmatprep.subr.mxu0 0.0
    %282 = vmatpush1.msra.mxu0 %v244
    %283 = vmatprep.subr.mxu0 0.0
    %284 = vmatpush1.msra.mxu0 0.0
    %285 = vmatprep.subr.mxu0 0.0
    %286 = vmatpush1.msra.mxu0 0.0
    %287 = vmatprep.subr.mxu0 0.0
    %288 = vmatpush1.msra.mxu0 0.0
    %289 = vmatprep.subr.mxu0 0.0
    %290 = vmatpush1.msra.mxu0 0.0
    %291 = vmatprep.subr.mxu0 0.0
    %292 = vmatpush1.msra.mxu0 0.0
    %293 = vmatprep.subr.mxu0 0.0
    %294 = vmatpush1.msra.mxu0 0.0
    %295 = vmatprep.subr.mxu0 0.0
    %296 = vmatpush1.msra.mxu0 0.0
    %297 = vmatprep.subr.mxu0 0.0
    %298 = vmatpush1.msra.mxu0 0.0
    %299 = vmatprep.subr.mxu0 0.0
    %300 = vmatpush1.msra.mxu0 0.0
    %301 = vmatprep.subr.mxu0 0.0
    %302 = vmatpush1.msra.mxu0 0.0
    %303 = vmatprep.subr.mxu0 0.0
    %304 = vmatpush1.msra.mxu0 0.0
    %305 = vmatprep.subr.mxu0 0.0
    %306 = vmatpush1.msra.mxu0 0.0
    %307 = vmatprep.subr.mxu0 0.0
    %308 = vmatpush1.msra.mxu0 0.0
    %309 = vmatprep.subr.mxu0 0.0
    %310 = vmatpush1.msra.mxu0 0.0
    %311 = vmatprep.subr.mxu0 0.0
    %312 = vmatpush1.msra.mxu0 0.0
    %313 = vmatprep.subr.mxu0 0.0
    %314 = vmatpush1.msra.mxu0 0.0
    %315 = vmatprep.mubr.f32.mxu0 0.0
    %316 = vmatmul.mubr.f32.gmra.mrb[0].mxu0 %v227
    %v317 = vpop.f32.mrb[0].mxu0
    %v318 = vadd.f32 %v249, %v317
    %v319 = vpop.f32.mrb[0].mxu0
    %320 = vmatprep.mubr.f32.mxu0 0.0
    %321 = vmatmul.mubr.f32.gmra.mrb[0].mxu0 %v228
    %v322 = vpop.f32.mrb[0].mxu0
    %v323 = vadd.f32 %v249, %v322
    %v324 = vpop.f32.mrb[0].mxu0
    %325 = vdwg.mxu0
    %v326 = vlaneseq
    %v327 = vand.u32 %v326, 127
    %vm328 = vcmp.lt.s32.totalorder %v327, 32
    %v329 = vsel %vm328, 1, 0
    %vm330 = vcmp.eq.s32.totalorder %v329, 1
    %v331 = vsel %vm330, %v318, 0.0
    %v332 = vsel %vm330, %v323, 0.0
    %333 = vadd.xlane.f32.xlu0 %v331
    %v334 = vpop.xlane.xlu0 %333
    %335 = vadd.xlane.f32.xlu0 %v332
    %v336 = vpop.xlane.xlu0 %335
    %v337 = vmul.f32 %v334, 0.03125
    %v338 = vmul.f32 %v336, 0.03125
    %v339 = vmul.f32 %v331, %v331
    %v340 = vmul.f32 %v332, %v332
    %341 = vadd.xlane.f32.xlu0 %v339
    %v342 = vpop.xlane.xlu0 %341
    %343 = vadd.xlane.f32.xlu0 %v340
    %v344 = vpop.xlane.xlu0 %343
    %v345 = vmul.f32 %v342, 0.03125
    %v346 = vmul.f32 %v344, 0.03125
    %v347 = vmul.f32 %v337, %v337
    %v348 = vmul.f32 %v338, %v338
    %v349 = vsub.f32 %v345, %v347
    %v350 = vsub.f32 %v346, %v348
    %v351 = vmax.f32 %v349, 0.0
    %v352 = vmax.f32 %v350, 0.0
    %v353 = vsub.f32 %v318, %v337
    %v354 = vsub.f32 %v323, %v338
    %v355 = vadd.f32 %v351, 1e-05
    %v356 = vadd.f32 %v352, 1e-05
    %v357 = vrsqrt.pop %v355
    %v358 = vrsqrt.pop %v356
    %v359 = vmul.f32 %v353, %v357
    %v360 = vmul.f32 %v354, %v358
    %v362 = vlaneseq
    %v363 = vshrl.u32 %v362, 7
    %v364 = vsub.s32 0, %v363
    %v365 = vrot.slane %v70, %v364
    %v367 = vmul.f32 %v359, %v365
    %v368 = vmul.f32 %v360, %v365
    %v370 = vlaneseq
    %v371 = vshrl.u32 %v370, 7
    %v372 = vsub.s32 0, %v371
    %v373 = vrot.slane %v71, %v372
    %v375 = vadd.f32 %v367, %v373
    %v376 = vadd.f32 %v368, %v373
    %377 = vst [vmem:[#allocation8] sm:$0xff] %v375
    %378 = vst [vmem:[#allocation8 + $0x8] sm:$0xff] %v376
    // Predicated region
    $region42: #{tpu_custom_call.1} parent=1 // pred_check
      _
    $region43: #{tpu_custom_call.1} parent=1 // pred_check_branch
      %380 = sbr.rel (0) target = $region45
    $region44: #{tpu_custom_call.1} parent=1 // pred_region
      %s382 = ssub.s32 256, 256
      %383 = vsyncadd [#allocation4], %s382
      %s384 = sshll.u32 [#allocation8], 4
      %s385 = int_to_ptr.vmem [resolvable:$true] %s384
      %390 = dma.vmem_to_hbm [thread:$0]  %s385, 256, %s7, [#allocation4], 128, 128, 8
    $region45: #{tpu_custom_call.1} parent=1 // pred_fallthru
      _
    // Predicated region
    $region46: #{tpu_custom_call.1} parent=1 // pred_check
      _
    $region47: #{tpu_custom_call.1} parent=1 // pred_check_branch
      %392 = sbr.rel (0) target = $region49
    $region48: #{tpu_custom_call.1} parent=1 // pred_region
      %393 = dma.done [#allocation4], 256
    $region49: #{tpu_custom_call.1} parent=1 // pred_fallthru
      _
    %394 = vsyncpa [#allocation3], 1
    %395 = vsyncpa [#allocation6], 1
    %396 = vsyncpa [#allocation4], 1

// kernel: tpu_custom_call.1
$region0: #{tpu_custom_call.1}
  #allocation0 [shape = 'u32[]', space=smem, size = 0x4, offset = 0x4, fixed_abs, tag = 'smem constant byte address 0x4 - core index']
  #allocation1 [shape = 'u32[144,128]{1,0:T(1,128)}', space=vmem, size = 0x12000, scoped, tag = 'internal scratch']
  %s0 = inlined_call_operand.hbm [shape: f32[16,128], index: 0, kind: input, shape index: {}]
  %s1 = inlined_call_operand.hbm [shape: f32[128,128], index: 1, kind: input, shape index: {}]
  %s2 = inlined_call_operand.vmem [shape: f32[1,128], index: 2, kind: input, shape index: {}]
  %s3 = inlined_call_operand.hbm [shape: f32[128,128], index: 3, kind: input, shape index: {}]
  %s4 = inlined_call_operand.vmem [shape: f32[1,128], index: 4, kind: input, shape index: {}]
  %s5 = inlined_call_operand.vmem [shape: f32[1,128], index: 5, kind: input, shape index: {}]
  %s6 = inlined_call_operand.vmem [shape: f32[1,128], index: 6, kind: input, shape index: {}]
  %s7 = inlined_call_operand.hbm [shape: f32[16,128], index: 7, kind: output, shape index: {}]
  %s8 = sld [smem:[#allocation0]]
  $region50: #{tpu_custom_call.1} parent=0
    _
  %s10 = ssub.s32 1, %s8
  %s11 = scalar_select 0, %s10, %s8
  $region1: #{tpu_custom_call.1} parent=0
    #allocation2 [shape = 'u8[8192]{0}', space=vmem, size = 0x2000, scoped, tag = 'input window, operand 0, single buffered']
    #allocation3 [shape = 's32[1]{0}', space=sflag, size = 0x4, scoped, tag = 'scoped memory for tpu_custom_call.1']
    #allocation4 [shape = 's32[1]{0}', space=sflag, size = 0x4, scoped, tag = 'scoped memory for tpu_custom_call.1']
    #allocation5 [shape = 'u8[65536]{0}', space=vmem, size = 0x10000, scoped, tag = 'input window, operand 1, single buffered']
    #allocation6 [shape = 's32[1]{0}', space=sflag, size = 0x4, scoped, tag = 'scoped memory for tpu_custom_call.1']
    #allocation7 [shape = 'u8[65536]{0}', space=vmem, size = 0x10000, scoped, tag = 'input window, operand 3, single buffered']
    #allocation8 [shape = 'u8[8192]{0}', space=vmem, size = 0x2000, scoped, tag = 'output window, operand 0, single buffered']
    %12 = vsyncpa [#allocation3], 0
    %13 = vsyncpa [#allocation6], 0
    %14 = vsyncpa [#allocation4], 0
    // Predicated region
    $region2: #{tpu_custom_call.1} parent=1 // pred_check
      _
    $region3: #{tpu_custom_call.1} parent=1 // pred_check_branch
      %16 = sbr.rel (0) target = $region5
    $region4: #{tpu_custom_call.1} parent=1 // pred_region
      %s18 = ssub.s32 256, 256
      %19 = vsyncadd [#allocation3], %s18
      %s20 = sshll.u32 [#allocation2], 4
      %s21 = int_to_ptr.vmem [resolvable:$true] %s20
      %26 = dma.hbm_to_vmem [thread:$0]  %s0, 256, %s21, [#allocation3], 128, 128, 8
    $region5: #{tpu_custom_call.1} parent=1 // pred_fallthru
      _
    // Predicated region
    $region6: #{tpu_custom_call.1} parent=1 // pred_check
      _
    $region7: #{tpu_custom_call.1} parent=1 // pred_check_branch
      %28 = sbr.rel (0) target = $region9
    $region8: #{tpu_custom_call.1} parent=1 // pred_region
      %s30 = ssub.s32 2048, 2048
      %31 = vsyncadd [#allocation6], %s30
      %s32 = sshll.u32 [#allocation5], 4
      %s33 = int_to_ptr.vmem [resolvable:$true] %s32
      %38 = dma.hbm_to_vmem [thread:$0]  %s1, 2048, %s33, [#allocation6], 128, 128, 8
    $region9: #{tpu_custom_call.1} parent=1 // pred_fallthru
      _
    // Predicated region
    $region10: #{tpu_custom_call.1} parent=1 // pred_check
      _
    $region11: #{tpu_custom_call.1} parent=1 // pred_check_branch
      %40 = sbr.rel (0) target = $region13
    $region12: #{tpu_custom_call.1} parent=1 // pred_region
      _
    $region13: #{tpu_custom_call.1} parent=1 // pred_fallthru
      _
    // Predicated region
    $region14: #{tpu_custom_call.1} parent=1 // pred_check
      _
    $region15: #{tpu_custom_call.1} parent=1 // pred_check_branch
      %42 = sbr.rel (0) target = $region17
    $region16: #{tpu_custom_call.1} parent=1 // pred_region
      %s44 = ssub.s32 2048, 2048
      %45 = vsyncadd [#allocation6], %s44
      %s46 = sshll.u32 [#allocation7], 4
      %s47 = int_to_ptr.vmem [resolvable:$true] %s46
      %52 = dma.hbm_to_vmem [thread:$0]  %s3, 2048, %s47, [#allocation6], 128, 128, 8
    $region17: #{tpu_custom_call.1} parent=1 // pred_fallthru
      _
    // Predicated region
    $region18: #{tpu_custom_call.1} parent=1 // pred_check
      _
    $region19: #{tpu_custom_call.1} parent=1 // pred_check_branch
      %54 = sbr.rel (0) target = $region21
    $region20: #{tpu_custom_call.1} parent=1 // pred_region
      _
    $region21: #{tpu_custom_call.1} parent=1 // pred_fallthru
      _
    // Predicated region
    $region22: #{tpu_custom_call.1} parent=1 // pred_check
      _
    $region23: #{tpu_custom_call.1} parent=1 // pred_check_branch
      %56 = sbr.rel (0) target = $region25
    $region24: #{tpu_custom_call.1} parent=1 // pred_region
      _
    $region25: #{tpu_custom_call.1} parent=1 // pred_fallthru
      _
    // Predicated region
    $region26: #{tpu_custom_call.1} parent=1 // pred_check
      _
    $region27: #{tpu_custom_call.1} parent=1 // pred_check_branch
      %58 = sbr.rel (0) target = $region29
    $region28: #{tpu_custom_call.1} parent=1 // pred_region
      _
    $region29: #{tpu_custom_call.1} parent=1 // pred_fallthru
      _
    // Predicated region
    $region30: #{tpu_custom_call.1} parent=1 // pred_check
      _
    $region31: #{tpu_custom_call.1} parent=1 // pred_check_branch
      %60 = sbr.rel (0) target = $region33
    $region32: #{tpu_custom_call.1} parent=1 // pred_region
      %61 = dma.done [#allocation3], 256
    $region33: #{tpu_custom_call.1} parent=1 // pred_fallthru
      _
    // Predicated region
    $region34: #{tpu_custom_call.1} parent=1 // pred_check
      _
    $region35: #{tpu_custom_call.1} parent=1 // pred_check_branch
      %63 = sbr.rel (0) target = $region37
    $region36: #{tpu_custom_call.1} parent=1 // pred_region
      %64 = dma.done [#allocation6], 2048
    $region37: #{tpu_custom_call.1} parent=1 // pred_fallthru
      _
    // Predicated region
    $region38: #{tpu_custom_call.1} parent=1 // pred_check
      _
    $region39: #{tpu_custom_call.1} parent=1 // pred_check_branch
      %66 = sbr.rel (0) target = $region41
    $region40: #{tpu_custom_call.1} parent=1 // pred_region
      %67 = dma.done [#allocation6], 2048
    $region41: #{tpu_custom_call.1} parent=1 // pred_fallthru
      _
    %v68 = vld [vmem:[%s2] sm:$0x1]
    %v69 = vld [vmem:[%s4] sm:$0x1]
    %v70 = vld [vmem:[%s5] sm:$0x1]
    %v71 = vld [vmem:[%s6] sm:$0x1]
    %v72 = vld [vmem:[#allocation2] sm:$0xff]
    %v73 = vld [vmem:[#allocation2 + $0x8] sm:$0xff]
    %v74 = vld [vmem:[#allocation5] sm:$0xff]
    %v75 = vld [vmem:[#allocation5 + $0x8] sm:$0xff]
    %v76 = vld [vmem:[#allocation5 + $0x10] sm:$0xff]
    %v77 = vld [vmem:[#allocation5 + $0x18] sm:$0xff]
    %v78 = vld [vmem:[#allocation5 + $0x20] sm:$0xff]
    %v79 = vld [vmem:[#allocation5 + $0x28] sm:$0xff]
    %v80 = vld [vmem:[#allocation5 + $0x30] sm:$0xff]
    %v81 = vld [vmem:[#allocation5 + $0x38] sm:$0xff]
    %v82 = vld [vmem:[#allocation5 + $0x40] sm:$0xff]
    %v83 = vld [vmem:[#allocation5 + $0x48] sm:$0xff]
    %v84 = vld [vmem:[#allocation5 + $0x50] sm:$0xff]
    %v85 = vld [vmem:[#allocation5 + $0x58] sm:$0xff]
    %v86 = vld [vmem:[#allocation5 + $0x60] sm:$0xff]
    %v87 = vld [vmem:[#allocation5 + $0x68] sm:$0xff]
    %v88 = vld [vmem:[#allocation5 + $0x70] sm:$0xff]
    %v89 = vld [vmem:[#allocation5 + $0x78] sm:$0xff]
    %v91 = vlaneseq
    %v92 = vshrl.u32 %v91, 7
    %v93 = vsub.s32 0, %v92
    %v94 = vrot.slane %v68, %v93
    %96 = vmatprep.subr.mxu0 0.0
    %97 = vmatpush1.msra.mxu0 %v74
    %98 = vmatprep.subr.mxu0 0.0
    %99 = vmatpush1.msra.mxu0 %v75
    %100 = vmatprep.subr.mxu0 0.0
    %101 = vmatpush1.msra.mxu0 %v76
    %102 = vmatprep.subr.mxu0 0.0
    %103 = vmatpush1.msra.mxu0 %v77
    %104 = vmatprep.subr.mxu0 0.0
    %105 = vmatpush1.msra.mxu0 %v78
    %106 = vmatprep.subr.mxu0 0.0
    %107 = vmatpush1.msra.mxu0 %v79
    %108 = vmatprep.subr.mxu0 0.0
    %109 = vmatpush1.msra.mxu0 %v80
    %110 = vmatprep.subr.mxu0 0.0
    %111 = vmatpush1.msra.mxu0 %v81
    %112 = vmatprep.subr.mxu0 0.0
    %113 = vmatpush1.msra.mxu0 %v82
    %114 = vmatprep.subr.mxu0 0.0
    %115 = vmatpush1.msra.mxu0 %v83
    %116 = vmatprep.subr.mxu0 0.0
    %117 = vmatpush1.msra.mxu0 %v84
    %118 = vmatprep.subr.mxu0 0.0
    %119 = vmatpush1.msra.mxu0 %v85
    %120 = vmatprep.subr.mxu0 0.0
    %121 = vmatpush1.msra.mxu0 %v86
    %122 = vmatprep.subr.mxu0 0.0
    %123 = vmatpush1.msra.mxu0 %v87
    %124 = vmatprep.subr.mxu0 0.0
    %125 = vmatpush1.msra.mxu0 %v88
    %126 = vmatprep.subr.mxu0 0.0
    %127 = vmatpush1.msra.mxu0 %v89
    %128 = vmatprep.subr.mxu0 0.0
    %129 = vmatpush1.msra.mxu0 0.0
    %130 = vmatprep.subr.mxu0 0.0
    %131 = vmatpush1.msra.mxu0 0.0
    %132 = vmatprep.subr.mxu0 0.0
    %133 = vmatpush1.msra.mxu0 0.0
    %134 = vmatprep.subr.mxu0 0.0
    %135 = vmatpush1.msra.mxu0 0.0
    %136 = vmatprep.subr.mxu0 0.0
    %137 = vmatpush1.msra.mxu0 0.0
    %138 = vmatprep.subr.mxu0 0.0
    %139 = vmatpush1.msra.mxu0 0.0
    %140 = vmatprep.subr.mxu0 0.0
    %141 = vmatpush1.msra.mxu0 0.0
    %142 = vmatprep.subr.mxu0 0.0
    %143 = vmatpush1.msra.mxu0 0.0
    %144 = vmatprep.subr.mxu0 0.0
    %145 = vmatpush1.msra.mxu0 0.0
    %146 = vmatprep.subr.mxu0 0.0
    %147 = vmatpush1.msra.mxu0 0.0
    %148 = vmatprep.subr.mxu0 0.0
    %149 = vmatpush1.msra.mxu0 0.0
    %150 = vmatprep.subr.mxu0 0.0
    %151 = vmatpush1.msra.mxu0 0.0
    %152 = vmatprep.subr.mxu0 0.0
    %153 = vmatpush1.msra.mxu0 0.0
    %154 = vmatprep.subr.mxu0 0.0
    %155 = vmatpush1.msra.mxu0 0.0
    %156 = vmatprep.subr.mxu0 0.0
    %157 = vmatpush1.msra.mxu0 0.0
    %158 = vmatprep.subr.mxu0 0.0
    %159 = vmatpush1.msra.mxu0 0.0
    %160 = vmatprep.mubr.f32.mxu0 0.0
    %161 = vmatmul.mubr.f32.gmra.mrb[0].mxu0 %v72
    %v162 = vpop.f32.mrb[0].mxu0
    %v163 = vadd.f32 %v94, %v162
    %v164 = vpop.f32.mrb[0].mxu0
    %165 = vmatprep.mubr.f32.mxu0 0.0
    %166 = vmatmul.mubr.f32.gmra.mrb[0].mxu0 %v73
    %v167 = vpop.f32.mrb[0].mxu0
    %v168 = vadd.f32 %v94, %v167
    %v169 = vpop.f32.mrb[0].mxu0
    %170 = vdwg.mxu0
    %v171 = vmul.f32 %v163, 0.5
    %v172 = vmul.f32 %v168, 0.5
    %v173 = vmul.f32 %v163, 0.70710677
    %v174 = vmul.f32 %v168, 0.70710677
    %vm175 = vcmp.ge.f32.partialorder %v173, 0.0
    %vm176 = vcmp.ge.f32.partialorder %v174, 0.0
    %v177 = vsel %vm175, 1.0, -1.0
    %v178 = vsel %vm176, 1.0, -1.0
    %v179 = vand.u32 2147483647, %v173
    %v180 = vand.u32 2147483647, %v174
    %v181 = vmul.f32 %v179, 0.3275911
    %v182 = vmul.f32 %v180, 0.3275911
    %v183 = vadd.f32 %v181, 1.0
    %v184 = vadd.f32 %v182, 1.0
    %v185 = vrcp.pop %v183
    %v186 = vrcp.pop %v184
    %v187 = vmul.f32 %v183, %v185
    %v188 = vmul.f32 %v184, %v186
    %v189 = vsub.f32 2.0, %v187
    %v190 = vsub.f32 2.0, %v188
    %v191 = vmul.f32 %v185, %v189
    %v192 = vmul.f32 %v186, %v190
    %v193 = vmul.f32 %v191, 1.0614054
    %v194 = vmul.f32 %v192, 1.0614054
    %v195 = vadd.f32 %v193, -1.4531521
    %v196 = vadd.f32 %v194, -1.4531521
    %v197 = vmul.f32 %v195, %v191
    %v198 = vmul.f32 %v196, %v192
    %v199 = vadd.f32 %v197, 1.4214138
    %v200 = vadd.f32 %v198, 1.4214138
    %v201 = vmul.f32 %v199, %v191
    %v202 = vmul.f32 %v200, %v192
    %v203 = vadd.f32 %v201, -0.28449672
    %v204 = vadd.f32 %v202, -0.28449672
    %v205 = vmul.f32 %v203, %v191
    %v206 = vmul.f32 %v204, %v192
    %v207 = vadd.f32 %v205, 0.2548296
    %v208 = vadd.f32 %v206, 0.2548296
    %v209 = vmul.f32 %v207, %v191
    %v210 = vmul.f32 %v208, %v192
    %v211 = vsub.f32 0.0, %v179
    %v212 = vsub.f32 0.0, %v180
    %v213 = vmul.f32 %v211, %v179
    %v214 = vmul.f32 %v212, %v180
    %v215 = vmul.f32 %v213, 1.442695
    %v216 = vpow.pop %v215
    %v217 = vmul.f32 %v214, 1.442695
    %v218 = vpow.pop %v217
    %v219 = vmul.f32 %v209, %v216
    %v220 = vmul.f32 %v210, %v218
    %v221 = vsub.f32 1.0, %v219
    %v222 = vsub.f32 1.0, %v220
    %v223 = vmul.f32 %v177, %v221
    %v224 = vmul.f32 %v178, %v222
    %v225 = vadd.f32 %v223, 1.0
    %v226 = vadd.f32 %v224, 1.0
    %v227 = vmul.f32 %v171, %v225
    %v228 = vmul.f32 %v172, %v226
    %v229 = vld [vmem:[#allocation7] sm:$0xff]
    %v230 = vld [vmem:[#allocation7 + $0x8] sm:$0xff]
    %v231 = vld [vmem:[#allocation7 + $0x10] sm:$0xff]
    %v232 = vld [vmem:[#allocation7 + $0x18] sm:$0xff]
    %v233 = vld [vmem:[#allocation7 + $0x20] sm:$0xff]
    %v234 = vld [vmem:[#allocation7 + $0x28] sm:$0xff]
    %v235 = vld [vmem:[#allocation7 + $0x30] sm:$0xff]
    %v236 = vld [vmem:[#allocation7 + $0x38] sm:$0xff]
    %v237 = vld [vmem:[#allocation7 + $0x40] sm:$0xff]
    %v238 = vld [vmem:[#allocation7 + $0x48] sm:$0xff]
    %v239 = vld [vmem:[#allocation7 + $0x50] sm:$0xff]
    %v240 = vld [vmem:[#allocation7 + $0x58] sm:$0xff]
    %v241 = vld [vmem:[#allocation7 + $0x60] sm:$0xff]
    %v242 = vld [vmem:[#allocation7 + $0x68] sm:$0xff]
    %v243 = vld [vmem:[#allocation7 + $0x70] sm:$0xff]
    %v244 = vld [vmem:[#allocation7 + $0x78] sm:$0xff]
    %v246 = vlaneseq
    %v247 = vshrl.u32 %v246, 7
    %v248 = vsub.s32 0, %v247
    %v249 = vrot.slane %v69, %v248
    %251 = vmatprep.subr.mxu0 0.0
    %252 = vmatpush1.msra.mxu0 %v229
    %253 = vmatprep.subr.mxu0 0.0
    %254 = vmatpush1.msra.mxu0 %v230
    %255 = vmatprep.subr.mxu0 0.0
    %256 = vmatpush1.msra.mxu0 %v231
    %257 = vmatprep.subr.mxu0 0.0
    %258 = vmatpush1.msra.mxu0 %v232
    %259 = vmatprep.subr.mxu0 0.0
    %260 = vmatpush1.msra.mxu0 %v233
    %261 = vmatprep.subr.mxu0 0.0
    %262 = vmatpush1.msra.mxu0 %v234
    %263 = vmatprep.subr.mxu0 0.0
    %264 = vmatpush1.msra.mxu0 %v235
    %265 = vmatprep.subr.mxu0 0.0
    %266 = vmatpush1.msra.mxu0 %v236
    %267 = vmatprep.subr.mxu0 0.0
    %268 = vmatpush1.msra.mxu0 %v237
    %269 = vmatprep.subr.mxu0 0.0
    %270 = vmatpush1.msra.mxu0 %v238
    %271 = vmatprep.subr.mxu0 0.0
    %272 = vmatpush1.msra.mxu0 %v239
    %273 = vmatprep.subr.mxu0 0.0
    %274 = vmatpush1.msra.mxu0 %v240
    %275 = vmatprep.subr.mxu0 0.0
    %276 = vmatpush1.msra.mxu0 %v241
    %277 = vmatprep.subr.mxu0 0.0
    %278 = vmatpush1.msra.mxu0 %v242
    %279 = vmatprep.subr.mxu0 0.0
    %280 = vmatpush1.msra.mxu0 %v243
    %281 = vmatprep.subr.mxu0 0.0
    %282 = vmatpush1.msra.mxu0 %v244
    %283 = vmatprep.subr.mxu0 0.0
    %284 = vmatpush1.msra.mxu0 0.0
    %285 = vmatprep.subr.mxu0 0.0
    %286 = vmatpush1.msra.mxu0 0.0
    %287 = vmatprep.subr.mxu0 0.0
    %288 = vmatpush1.msra.mxu0 0.0
    %289 = vmatprep.subr.mxu0 0.0
    %290 = vmatpush1.msra.mxu0 0.0
    %291 = vmatprep.subr.mxu0 0.0
    %292 = vmatpush1.msra.mxu0 0.0
    %293 = vmatprep.subr.mxu0 0.0
    %294 = vmatpush1.msra.mxu0 0.0
    %295 = vmatprep.subr.mxu0 0.0
    %296 = vmatpush1.msra.mxu0 0.0
    %297 = vmatprep.subr.mxu0 0.0
    %298 = vmatpush1.msra.mxu0 0.0
    %299 = vmatprep.subr.mxu0 0.0
    %300 = vmatpush1.msra.mxu0 0.0
    %301 = vmatprep.subr.mxu0 0.0
    %302 = vmatpush1.msra.mxu0 0.0
    %303 = vmatprep.subr.mxu0 0.0
    %304 = vmatpush1.msra.mxu0 0.0
    %305 = vmatprep.subr.mxu0 0.0
    %306 = vmatpush1.msra.mxu0 0.0
    %307 = vmatprep.subr.mxu0 0.0
    %308 = vmatpush1.msra.mxu0 0.0
    %309 = vmatprep.subr.mxu0 0.0
    %310 = vmatpush1.msra.mxu0 0.0
    %311 = vmatprep.subr.mxu0 0.0
    %312 = vmatpush1.msra.mxu0 0.0
    %313 = vmatprep.subr.mxu0 0.0
    %314 = vmatpush1.msra.mxu0 0.0
    %315 = vmatprep.mubr.f32.mxu0 0.0
    %316 = vmatmul.mubr.f32.gmra.mrb[0].mxu0 %v227
    %v317 = vpop.f32.mrb[0].mxu0
    %v318 = vadd.f32 %v249, %v317
    %v319 = vpop.f32.mrb[0].mxu0
    %320 = vmatprep.mubr.f32.mxu0 0.0
    %321 = vmatmul.mubr.f32.gmra.mrb[0].mxu0 %v228
    %v322 = vpop.f32.mrb[0].mxu0
    %v323 = vadd.f32 %v249, %v322
    %v324 = vpop.f32.mrb[0].mxu0
    %325 = vdwg.mxu0
    %v326 = vlaneseq
    %v327 = vand.u32 %v326, 127
    %vm328 = vcmp.lt.s32.totalorder %v327, 32
    %v329 = vsel %vm328, 1, 0
    %vm330 = vcmp.eq.s32.totalorder %v329, 1
    %v331 = vsel %vm330, %v318, 0.0
    %v332 = vsel %vm330, %v323, 0.0
    %333 = vadd.xlane.f32.xlu0 %v331
    %v334 = vpop.xlane.xlu0 %333
    %335 = vadd.xlane.f32.xlu0 %v332
    %v336 = vpop.xlane.xlu0 %335
    %v337 = vmul.f32 %v334, 0.03125
    %v338 = vmul.f32 %v336, 0.03125
    %v339 = vmul.f32 %v331, %v331
    %v340 = vmul.f32 %v332, %v332
    %341 = vadd.xlane.f32.xlu0 %v339
    %v342 = vpop.xlane.xlu0 %341
    %343 = vadd.xlane.f32.xlu0 %v340
    %v344 = vpop.xlane.xlu0 %343
    %v345 = vmul.f32 %v342, 0.03125
    %v346 = vmul.f32 %v344, 0.03125
    %v347 = vmul.f32 %v337, %v337
    %v348 = vmul.f32 %v338, %v338
    %v349 = vsub.f32 %v345, %v347
    %v350 = vsub.f32 %v346, %v348
    %v351 = vmax.f32 %v349, 0.0
    %v352 = vmax.f32 %v350, 0.0
    %v353 = vsub.f32 %v318, %v337
    %v354 = vsub.f32 %v323, %v338
    %v355 = vadd.f32 %v351, 1e-05
    %v356 = vadd.f32 %v352, 1e-05
    %v357 = vrsqrt.pop %v355
    %v358 = vrsqrt.pop %v356
    %v359 = vmul.f32 %v353, %v357
    %v360 = vmul.f32 %v354, %v358
    %v362 = vlaneseq
    %v363 = vshrl.u32 %v362, 7
    %v364 = vsub.s32 0, %v363
    %v365 = vrot.slane %v70, %v364
    %v367 = vmul.f32 %v359, %v365
    %v368 = vmul.f32 %v360, %v365
    %v370 = vlaneseq
    %v371 = vshrl.u32 %v370, 7
    %v372 = vsub.s32 0, %v371
    %v373 = vrot.slane %v71, %v372
    %v375 = vadd.f32 %v367, %v373
    %v376 = vadd.f32 %v368, %v373
    %377 = vst [vmem:[#allocation8] sm:$0xff] %v375
    %378 = vst [vmem:[#allocation8 + $0x8] sm:$0xff] %v376
    // Predicated region
    $region42: #{tpu_custom_call.1} parent=1 // pred_check
      _
    $region43: #{tpu_custom_call.1} parent=1 // pred_check_branch
      %380 = sbr.rel (0) target = $region45
    $region44: #{tpu_custom_call.1} parent=1 // pred_region
      %s382 = ssub.s32 256, 256
      %383 = vsyncadd [#allocation4], %s382
      %s384 = sshll.u32 [#allocation8], 4
      %s385 = int_to_ptr.vmem [resolvable:$true] %s384
      %390 = dma.vmem_to_hbm [thread:$0]  %s385, 256, %s7, [#allocation4], 128, 128, 8
    $region45: #{tpu_custom_call.1} parent=1 // pred_fallthru
      _
    // Predicated region
    $region46: #{tpu_custom_call.1} parent=1 // pred_check
      _
    $region47: #{tpu_custom_call.1} parent=1 // pred_check_branch
      %392 = sbr.rel (0) target = $region49
    $region48: #{tpu_custom_call.1} parent=1 // pred_region
      %393 = dma.done [#allocation4], 256
    $region49: #{tpu_custom_call.1} parent=1 // pred_fallthru
      _
    %394 = vsyncpa [#allocation3], 1
    %395 = vsyncpa [#allocation6], 1
    %396 = vsyncpa [#allocation4], 1

</llo_original>
